<compile_context>
chip_gen: v6e
topology: v6e:2x2x1
jax: 0.10.0
libtpu: 0.0.40
codegen_flags: <defaults>
</compile_context>

<pallas_src>
import jax
import jax.numpy as jnp
from jax.experimental import pallas as pl
from jax.experimental.pallas import tpu as pltpu


def att_kernel(x_ref, w_ref, b_ref, u_ref, o_ref):
    bb, s, d = x_ref.shape

    x = x_ref[...]                                  # (bb, S, D) native dtype (MXU path)
    x2 = x.reshape(bb * s, d)                       # M = bb*S rows for one MXU matmul

    # uit = tanh(x @ W + b)  -> (bb*S, Ap), f32 accumulation on the MXU
    uit = jnp.tanh(
        jnp.dot(x2, w_ref[...], preferred_element_type=jnp.float32)
        + b_ref[...].astype(jnp.float32)            # (1, Ap) broadcast over rows
    )

    # logits = uit . u  as VPU multiply + lane reduce (u is (1, Ap); padded lanes are 0)
    logits = jnp.sum(uit * u_ref[...].astype(jnp.float32), axis=-1, keepdims=True)
    logits = logits.reshape(bb, s, 1)               # (bb, S, 1)

    # exp / normalize over S.  Identical algebra to exp(a) / (sum exp(a) + 1e-8), but
    # overflow-safe: subtract the per-row max and rescale the epsilon by exp(-max).
    m = jnp.max(logits, axis=1, keepdims=True)                        # (bb, 1, 1)
    p = jnp.exp(logits - m)                                           # (bb, S, 1)
    denom = jnp.sum(p, axis=1, keepdims=True) + 1e-8 * jnp.exp(-m)    # (bb, 1, 1)

    inv = pl.reciprocal(denom, approx=True)         # EUP slot, ~free
    inv = inv * (2.0 - denom * inv)                 # one Newton step -> full f32 accuracy

    # TODO(synk): optional `mask` argument of AttLayer.forward is not plumbed through
    # (forward is exercised with mask=None); a mask would multiply `p` here before the sums.

    # Weighted sum over S (VPU mul + XLU sublane reduce); normalization folded in once.
    xf = x.astype(jnp.float32)
    out = jnp.sum(xf * p, axis=1) * inv[:, 0, :]    # (bb, D)
    o_ref[...] = out.astype(o_ref.dtype)


def _choose_block_batch(B, S, D, itemsize, *, vmem_budget=8 << 20, target_m=256):
    """How many batch rows per grid step.

    Constraints:
      * bb divides B and (unless bb == B) is a multiple of 8 so the (bb, D) output
        block obeys the (8, 128) tiling rule,
      * the double-buffered x block stays within a conservative VMEM budget
        (safe for v5e's 16 MiB scoped default and v7x's 64 MiB physical VMEM),
      * bb*S reaches ~256 MXU rows but does not grow far past it, so larger B keeps
        >= 2 grid steps for megacore / v7x dual-TensorCore sharding.
    """
    def fits(bb):
        return 2 * bb * S * D * itemsize <= vmem_budget

    want = max(1, -(-target_m // max(S, 1)))        # ceil(target_m / S)
    best = None
    for bb in range(1, B + 1):
        if B % bb:
            continue
        if bb != B and bb % 8:
            continue
        if not fits(bb):
            continue
        best = bb
        if bb >= want:
            break
    return best if best is not None else B


@jax.jit
def att_layer_pallas(x, W, b, u):
    """x: (B, S, D), W: (D, A), b: (A,), u: (A, 1)  ->  (B, D)"""
    B, S, D = x.shape
    A = W.shape[1]

    # Zero-pad the attention axis to a lane-dense multiple of 128 (inert, see header).
    Ap = ((A + 127) // 128) * 128
    pad = Ap - A
    Wp = jnp.pad(W, ((0, 0), (0, pad)))
    bp = jnp.pad(b, (0, pad)).reshape(1, Ap)
    up = jnp.pad(u.reshape(-1), (0, pad)).reshape(1, Ap)   # (1, Ap): VPU/XLU path, no N=1 matmul

    bb = _choose_block_batch(B, S, D, x.dtype.itemsize)
    grid = (B // bb,)

    return pl.pallas_call(
        att_kernel,
        out_shape=jax.ShapeDtypeStruct((B, D), x.dtype),
        grid=grid,
        in_specs=[
            pl.BlockSpec((bb, S, D), lambda i: (i, 0, 0)),  # streamed batch block
            pl.BlockSpec((D, Ap), lambda i: (0, 0)),        # constant index: VMEM-resident
            pl.BlockSpec((1, Ap), lambda i: (0, 0)),
            pl.BlockSpec((1, Ap), lambda i: (0, 0)),
        ],
        out_specs=pl.BlockSpec((bb, D), lambda i: (i, 0)),
        compiler_params=pltpu.CompilerParams(
            dimension_semantics=("parallel",),              # shard batch blocks across TCs
        ),
    )(x, Wp, bp, up)


def att_layer_ref(x, W, b, u):
    # Literal translation of AttLayer.forward (mask=None).
    uit = jnp.tanh(jnp.matmul(x, W) + b)
    ait = jnp.exp(jnp.matmul(uit, u)[..., 0])
    ait = ait / (jnp.sum(ait, axis=1, keepdims=True) + 1e-8)
    return jnp.sum(x * ait[..., None], axis=1)


if __name__ == "__main__":
    # Small shapes consistent with the module's forward: x (B, S, D), attention_dim A.
    B, S, D, A = 2, 8, 32, 100

    key = jax.random.PRNGKey(0)
    kx, kw, kb, ku = jax.random.split(key, 4)
    x = jax.random.normal(kx, (B, S, D), dtype=jnp.float32)
    W = jax.random.normal(kw, (D, A), dtype=jnp.float32)
    b = jax.random.normal(kb, (A,), dtype=jnp.float32)
    u = jax.random.normal(ku, (A, 1), dtype=jnp.float32)

    out = jax.block_until_ready(att_layer_pallas(x, W, b, u))
    ref = att_layer_ref(x, W, b, u)

    assert out.shape == (B, D)
    # Tolerance accommodates matmul-precision / reassociation differences between the
    # XLA reference and the Mosaic MXU path; real bugs show up orders of magnitude larger.
    assert jnp.allclose(out, ref, atol=1e-3, rtol=1e-3), (
        "mismatch vs reference: max abs diff = "
        f"{float(jnp.max(jnp.abs(out - ref)))}"
    )
    print("KERNEL_OK")
</pallas_src>

<mosaic_0001>
module attributes {stable_mosaic.version = 11 : i64} {
  func.func @att_kernel(%arg0: i32, %arg1: memref<2x8x32xf32, #tpu.memory_space<vmem>>, %arg2: memref<32x128xf32, #tpu.memory_space<vmem>>, %arg3: memref<1x128xf32, #tpu.memory_space<vmem>>, %arg4: memref<1x128xf32, #tpu.memory_space<vmem>>, %arg5: memref<2x32xf32, #tpu.memory_space<vmem>>) attributes {dimension_semantics = [#tpu.dimension_semantics<parallel>], iteration_bounds = array<i64: 1>, scalar_prefetch = 0 : i64, scratch_operands = 0 : i64, tpu.core_type = #tpu.core_type<tc>, window_params = [{transform_indices = @transform_0, window_bounds = array<i64: 2, 8, 32>}, {pipeline_mode = #tpu.pipeline_mode<synchronous>, transform_indices = @transform_1, window_bounds = array<i64: 32, 128>}, {pipeline_mode = #tpu.pipeline_mode<synchronous>, transform_indices = @transform_2, window_bounds = array<i64: 1, 128>}, {pipeline_mode = #tpu.pipeline_mode<synchronous>, transform_indices = @transform_3, window_bounds = array<i64: 1, 128>}, {transform_indices = @transform_4, window_bounds = array<i64: 2, 32>}]} {
    %c0 = arith.constant 0 : index
    %c0_0 = arith.constant 0 : index
    %c0_1 = arith.constant 0 : index
    %0 = vector.load %arg1[%c0, %c0_0, %c0_1] : memref<2x8x32xf32, #tpu.memory_space<vmem>>, vector<2x8x32xf32>
    %1 = vector.shape_cast %0 : vector<2x8x32xf32> to vector<16x32xf32>
    %c0_2 = arith.constant 0 : index
    %c0_3 = arith.constant 0 : index
    %2 = vector.load %arg2[%c0_2, %c0_3] : memref<32x128xf32, #tpu.memory_space<vmem>>, vector<32x128xf32>
    %cst = arith.constant dense<0.000000e+00> : vector<16x128xf32>
    %3 = tpu.matmul %1, %2, %cst {dimension_numbers = #tpu.dot_dimension_numbers<[1], [0], [0], [1], [0, 0, 1, 1], [], []>} : vector<16x32xf32>, vector<32x128xf32>, vector<16x128xf32> -> vector<16x128xf32>
    %c0_4 = arith.constant 0 : index
    %c0_5 = arith.constant 0 : index
    %4 = vector.load %arg3[%c0_4, %c0_5] : memref<1x128xf32, #tpu.memory_space<vmem>>, vector<1x128xf32>
    %5 = vector.broadcast %4 : vector<1x128xf32> to vector<16x128xf32>
    %6 = arith.addf %3, %5 : vector<16x128xf32>
    %7 = math.tanh %6 : vector<16x128xf32>
    %c0_6 = arith.constant 0 : index
    %c0_7 = arith.constant 0 : index
    %8 = vector.load %arg4[%c0_6, %c0_7] : memref<1x128xf32, #tpu.memory_space<vmem>>, vector<1x128xf32>
    %9 = vector.broadcast %8 : vector<1x128xf32> to vector<16x128xf32>
    %10 = arith.mulf %7, %9 : vector<16x128xf32>
    %cst_8 = arith.constant dense<0.000000e+00> : vector<16xf32>
    %11 = vector.multi_reduction <add>, %10, %cst_8 [1] : vector<16x128xf32> to vector<16xf32>
    %12 = vector.shape_cast %11 : vector<16xf32> to vector<16x1xf32>
    %13 = vector.shape_cast %12 : vector<16x1xf32> to vector<2x8x1xf32>
    %cst_9 = arith.constant dense<0xFF800000> : vector<2x1xf32>
    %14 = vector.multi_reduction <maximumf>, %13, %cst_9 [1] : vector<2x8x1xf32> to vector<2x1xf32>
    %15 = vector.shape_cast %14 : vector<2x1xf32> to vector<2x1x1xf32>
    %16 = vector.broadcast %15 : vector<2x1x1xf32> to vector<2x8x1xf32>
    %17 = arith.subf %13, %16 : vector<2x8x1xf32>
    %18 = math.exp %17 : vector<2x8x1xf32>
    %cst_10 = arith.constant dense<0.000000e+00> : vector<2x1xf32>
    %19 = vector.multi_reduction <add>, %18, %cst_10 [1] : vector<2x8x1xf32> to vector<2x1xf32>
    %20 = vector.shape_cast %19 : vector<2x1xf32> to vector<2x1x1xf32>
    %cst_11 = arith.constant 0.000000e+00 : f32
    %21 = vector.broadcast %cst_11 : f32 to vector<2x1x1xf32>
    %22 = arith.subf %21, %15 : vector<2x1x1xf32>
    %23 = math.exp %22 : vector<2x1x1xf32>
    %cst_12 = arith.constant 9.99999993E-9 : f32
    %24 = vector.broadcast %cst_12 : f32 to vector<2x1x1xf32>
    %25 = arith.mulf %24, %23 : vector<2x1x1xf32>
    %26 = arith.addf %20, %25 : vector<2x1x1xf32>
    %27 = tpu.reciprocal %26 {approx = true} : vector<2x1x1xf32> -> vector<2x1x1xf32>
    %28 = arith.mulf %26, %27 : vector<2x1x1xf32>
    %cst_13 = arith.constant 2.000000e+00 : f32
    %29 = vector.broadcast %cst_13 : f32 to vector<2x1x1xf32>
    %30 = arith.subf %29, %28 : vector<2x1x1xf32>
    %31 = arith.mulf %27, %30 : vector<2x1x1xf32>
    %32 = vector.broadcast %18 : vector<2x8x1xf32> to vector<2x8x32xf32>
    %33 = arith.mulf %0, %32 : vector<2x8x32xf32>
    %cst_14 = arith.constant dense<0.000000e+00> : vector<2x32xf32>
    %34 = vector.multi_reduction <add>, %33, %cst_14 [1] : vector<2x8x32xf32> to vector<2x32xf32>
    %35 = vector.shape_cast %31 : vector<2x1x1xf32> to vector<2x1xf32>
    %36 = vector.broadcast %35 : vector<2x1xf32> to vector<2x32xf32>
    %37 = arith.mulf %34, %36 : vector<2x32xf32>
    %c0_15 = arith.constant 0 : index
    %c0_16 = arith.constant 0 : index
    %38 = vector.load %arg5[%c0_15, %c0_16] : memref<2x32xf32, #tpu.memory_space<vmem>>, vector<2x32xf32>
    tpu.vector_store %arg5[%c0_15, %c0_16], %37 {strides = array<i32>} : memref<2x32xf32, #tpu.memory_space<vmem>>, vector<2x32xf32>,
    return
  }
  func.func @transform_0(%arg0: i32) -> (i32, i32, i32) {
    %c0_i32 = arith.constant 0 : i32
    %c0_i32_0 = arith.constant 0 : i32
    %c0_i32_1 = arith.constant 0 : i32
    return %arg0, %c0_i32, %c0_i32_0 : i32, i32, i32
  }
  func.func @transform_1(%arg0: i32) -> (i32, i32) {
    %c0_i32 = arith.constant 0 : i32
    %c0_i32_0 = arith.constant 0 : i32
    %c0_i32_1 = arith.constant 0 : i32
    return %c0_i32, %c0_i32_0 : i32, i32
  }
  func.func @transform_2(%arg0: i32) -> (i32, i32) {
    %c0_i32 = arith.constant 0 : i32
    %c0_i32_0 = arith.constant 0 : i32
    %c0_i32_1 = arith.constant 0 : i32
    return %c0_i32, %c0_i32_0 : i32, i32
  }
  func.func @transform_3(%arg0: i32) -> (i32, i32) {
    %c0_i32 = arith.constant 0 : i32
    %c0_i32_0 = arith.constant 0 : i32
    %c0_i32_1 = arith.constant 0 : i32
    return %c0_i32, %c0_i32_0 : i32, i32
  }
  func.func @transform_4(%arg0: i32) -> (i32, i32) {
    %c0_i32 = arith.constant 0 : i32
    %c0_i32_0 = arith.constant 0 : i32
    return %arg0, %c0_i32 : i32, i32
  }
}

</mosaic_0001>

<llo_original>
// kernel: att_layer_pallas.1
$region0: #{att_layer_pallas.1}
  #allocation0 [shape = 'u32[]', space=smem, size = 0x4, offset = 0x4, fixed_abs, tag = 'smem constant byte address 0x4 - core index']
  #allocation1 [shape = 'u32[144,128]{1,0:T(1,128)}', space=vmem, size = 0x12000, scoped, tag = 'internal scratch']
  %s0 = inlined_call_operand.vmem [shape: f32[2,8,32], index: 0, kind: input, shape index: {}]
  %s1 = inlined_call_operand.vmem [shape: f32[32,128], index: 1, kind: input, shape index: {}]
  %s2 = inlined_call_operand.vmem [shape: f32[1,128], index: 2, kind: input, shape index: {}]
  %s3 = inlined_call_operand.vmem [shape: f32[1,128], index: 3, kind: input, shape index: {}]
  %s4 = inlined_call_operand.hbm [shape: f32[2,32], index: 4, kind: output, shape index: {}]
  %s5 = sld [smem:[#allocation0]]
  $region26: #{att_layer_pallas.1} parent=0
    _
  %s7 = ssub.s32 1, %s5
  %s8 = scalar_select 0, %s7, %s5
  $region1: #{att_layer_pallas.1} parent=0
    #allocation2 [shape = 'u8[1024]{0}', space=vmem, size = 0x400, scoped, tag = 'output window, operand 0, single buffered']
    #allocation3 [shape = 's32[1]{0}', space=sflag, size = 0x4, scoped, tag = 'scoped memory for att_layer_pallas.1']
    %9 = vsyncpa [#allocation3], 0
    // Predicated region
    $region2: #{att_layer_pallas.1} parent=1 // pred_check
      _
    $region3: #{att_layer_pallas.1} parent=1 // pred_check_branch
      %11 = sbr.rel (0) target = $region5
    $region4: #{att_layer_pallas.1} parent=1 // pred_region
      _
    $region5: #{att_layer_pallas.1} parent=1 // pred_fallthru
      _
    // Predicated region
    $region6: #{att_layer_pallas.1} parent=1 // pred_check
      _
    $region7: #{att_layer_pallas.1} parent=1 // pred_check_branch
      %13 = sbr.rel (0) target = $region9
    $region8: #{att_layer_pallas.1} parent=1 // pred_region
      _
    $region9: #{att_layer_pallas.1} parent=1 // pred_fallthru
      _
    // Predicated region
    $region10: #{att_layer_pallas.1} parent=1 // pred_check
      _
    $region11: #{att_layer_pallas.1} parent=1 // pred_check_branch
      %15 = sbr.rel (0) target = $region13
    $region12: #{att_layer_pallas.1} parent=1 // pred_region
      _
    $region13: #{att_layer_pallas.1} parent=1 // pred_fallthru
      _
    // Predicated region
    $region14: #{att_layer_pallas.1} parent=1 // pred_check
      _
    $region15: #{att_layer_pallas.1} parent=1 // pred_check_branch
      %17 = sbr.rel (0) target = $region17
    $region16: #{att_layer_pallas.1} parent=1 // pred_region
      _
    $region17: #{att_layer_pallas.1} parent=1 // pred_fallthru
      _
    %v18 = vld [vmem:[%s0] sm:$0xff]
    %v19 = vld [vmem:[%s0 + $0x8] sm:$0xff]
    %v20 = vld [vmem:[%s1] sm:$0xff]
    %v21 = vld [vmem:[%s1 + $0x8] sm:$0xff]
    %v22 = vld [vmem:[%s1 + $0x10] sm:$0xff]
    %v23 = vld [vmem:[%s1 + $0x18] sm:$0xff]
    %v24 = vld [vmem:[%s2] sm:$0x1]
    %v26 = vlaneseq
    %v27 = vshrl.u32 %v26, 7
    %v28 = vsub.s32 0, %v27
    %v29 = vrot.slane %v24, %v28
    %vm31 = vcmask 261120
    %v33 = vsel %vm31, %v18, 0
    %v36 = vsel %vm31, %v19, 0
    %38 = vmatprep.subr.mxu0 0.0
    %39 = vmatpush1.msra.mxu0 0.0
    %40 = vmatprep.subr.mxu0 0.0
    %41 = vmatpush1.msra.mxu0 0.0
    %42 = vmatprep.subr.mxu0 0.0
    %43 = vmatpush1.msra.mxu0 0.0
    %44 = vmatprep.subr.mxu0 0.0
    %45 = vmatpush1.msra.mxu0 0.0
    %46 = vmatprep.subr.mxu0 0.0
    %47 = vmatpush1.msra.mxu0 0.0
    %48 = vmatprep.subr.mxu0 0.0
    %49 = vmatpush1.msra.mxu0 0.0
    %50 = vmatprep.subr.mxu0 0.0
    %51 = vmatpush1.msra.mxu0 0.0
    %52 = vmatprep.subr.mxu0 0.0
    %53 = vmatpush1.msra.mxu0 0.0
    %54 = vmatprep.subr.mxu0 0.0
    %55 = vmatpush1.msra.mxu0 0.0
    %56 = vmatprep.subr.mxu0 0.0
    %57 = vmatpush1.msra.mxu0 0.0
    %58 = vmatprep.subr.mxu0 0.0
    %59 = vmatpush1.msra.mxu0 0.0
    %60 = vmatprep.subr.mxu0 0.0
    %61 = vmatpush1.msra.mxu0 0.0
    %62 = vmatprep.subr.mxu0 0.0
    %63 = vmatpush1.msra.mxu0 %v23
    %64 = vmatprep.subr.mxu0 0.0
    %65 = vmatpush1.msra.mxu0 %v22
    %66 = vmatprep.subr.mxu0 0.0
    %67 = vmatpush1.msra.mxu0 %v21
    %68 = vmatprep.subr.mxu0 0.0
    %69 = vmatpush1.msra.mxu0 %v20
    %70 = vmatprep.subr.mxu0 0.0
    %71 = vmatpush2.msra.mxu0 0.0
    %72 = vmatprep.subr.mxu0 0.0
    %73 = vmatpush2.msra.mxu0 0.0
    %74 = vmatprep.subr.mxu0 0.0
    %75 = vmatpush2.msra.mxu0 0.0
    %76 = vmatprep.subr.mxu0 0.0
    %77 = vmatpush2.msra.mxu0 0.0
    %78 = vmatprep.subr.mxu0 0.0
    %79 = vmatpush2.msra.mxu0 0.0
    %80 = vmatprep.subr.mxu0 0.0
    %81 = vmatpush2.msra.mxu0 0.0
    %82 = vmatprep.subr.mxu0 0.0
    %83 = vmatpush2.msra.mxu0 0.0
    %84 = vmatprep.subr.mxu0 0.0
    %85 = vmatpush2.msra.mxu0 0.0
    %86 = vmatprep.subr.mxu0 0.0
    %87 = vmatpush2.msra.mxu0 0.0
    %88 = vmatprep.subr.mxu0 0.0
    %89 = vmatpush2.msra.mxu0 0.0
    %90 = vmatprep.subr.mxu0 0.0
    %91 = vmatpush2.msra.mxu0 0.0
    %92 = vmatprep.subr.mxu0 0.0
    %93 = vmatpush2.msra.mxu0 0.0
    %94 = vmatprep.subr.mxu0 0.0
    %95 = vmatpush2.msra.mxu0 0.0
    %96 = vmatprep.subr.mxu0 0.0
    %97 = vmatpush2.msra.mxu0 0.0
    %98 = vmatprep.subr.mxu0 0.0
    %99 = vmatpush2.msra.mxu0 0.0
    %100 = vmatprep.subr.mxu0 0.0
    %101 = vmatpush2.msra.mxu0 0.0
    %102 = vmatprep.mubr.f32.mxu0 0.0
    %103 = vmatmul.mubr.f32.gmra.mxu0 %v33
    %v104 = vpop.f32.mrf.mxu0
    %v105 = vadd.f32 %v29, %v104
    %v106 = vpop.f32.mrf.mxu0
    %107 = vmatprep.mubr.f32.mxu0 0.0
    %108 = vmatmul.mubr.f32.gmra.mxu0 %v36
    %v109 = vpop.f32.mrf.mxu0
    %v110 = vadd.f32 %v29, %v109
    %v111 = vpop.f32.mrf.mxu0
    %112 = vdwg.mxu0
    %v113 = vtanh.pop %v105
    %v114 = vtanh.pop %v110
    %v115 = vld [vmem:[%s3] sm:$0x1]
    %v117 = vlaneseq
    %v118 = vshrl.u32 %v117, 7
    %v119 = vsub.s32 0, %v118
    %v120 = vrot.slane %v115, %v119
    %v122 = vmul.f32 %v113, %v120
    %v123 = vmul.f32 %v114, %v120
    %124 = vadd.xlane.f32.xlu0 %v122
    %v125 = vpop.xlane.xlu0 %124
    %126 = vadd.xlane.f32.xlu0 %v123
    %v127 = vpop.xlane.xlu0 %126
    %v128 = vrot.slane %v125, 4
    %v129 = vmax.f32 %v125, %v128
    %v130 = vrot.slane %v129, 2
    %v131 = vmax.f32 %v129, %v130
    %v132 = vrot.slane %v131, 1
    %v133 = vmax.f32 %v131, %v132
    %v134 = vrot.slane %v127, 4
    %v135 = vmax.f32 %v127, %v134
    %v136 = vrot.slane %v135, 2
    %v137 = vmax.f32 %v135, %v136
    %v138 = vrot.slane %v137, 1
    %v139 = vmax.f32 %v137, %v138
    %v140 = vsub.f32 %v125, %v133
    %v141 = vsub.f32 %v127, %v139
    %v142 = vmul.f32 %v140, 1.442695
    %v143 = vpow.pop %v142
    %v144 = vmul.f32 %v141, 1.442695
    %v145 = vpow.pop %v144
    %v146 = vrot.slane %v143, 4
    %v147 = vadd.f32 %v143, %v146
    %v148 = vrot.slane %v147, 2
    %v149 = vadd.f32 %v147, %v148
    %v150 = vrot.slane %v149, 1
    %v151 = vadd.f32 %v149, %v150
    %v152 = vrot.slane %v145, 4
    %v153 = vadd.f32 %v145, %v152
    %v154 = vrot.slane %v153, 2
    %v155 = vadd.f32 %v153, %v154
    %v156 = vrot.slane %v155, 1
    %v157 = vadd.f32 %v155, %v156
    %v158 = vsub.f32 0.0, %v133
    %v159 = vsub.f32 0.0, %v139
    %v160 = vmul.f32 %v158, 1.442695
    %v161 = vpow.pop %v160
    %v162 = vmul.f32 %v159, 1.442695
    %v163 = vpow.pop %v162
    %v164 = vmul.f32 %v161, 1e-08
    %v165 = vmul.f32 %v163, 1e-08
    %v166 = vadd.f32 %v151, %v164
    %v167 = vadd.f32 %v157, %v165
    %v168 = vrcp.pop %v166
    %v169 = vrcp.pop %v167
    %v170 = vmul.f32 %v166, %v168
    %v171 = vmul.f32 %v167, %v169
    %v172 = vsub.f32 2.0, %v170
    %v173 = vsub.f32 2.0, %v171
    %v174 = vmul.f32 %v168, %v172
    %v175 = vmul.f32 %v169, %v173
    %v176 = vmul.f32 %v18, %v143
    %v177 = vmul.f32 %v19, %v145
    %v178 = vsel %vm31, %v176, 0.0
    %v179 = vrot.slane %v178, 4
    %v180 = vadd.f32 %v178, %v179
    %v181 = vrot.slane %v180, 2
    %v182 = vadd.f32 %v180, %v181
    %v183 = vrot.slane %v182, 1
    %v184 = vadd.f32 %v182, %v183
    %v185 = vsel %vm31, %v177, 0.0
    %v186 = vrot.slane %v185, 4
    %v187 = vadd.f32 %v185, %v186
    %v188 = vrot.slane %v187, 2
    %v189 = vadd.f32 %v187, %v188
    %v190 = vrot.slane %v189, 1
    %v191 = vadd.f32 %v189, %v190
    %v192 = vmul.f32 %v184, %v174
    %v193 = vmul.f32 %v191, %v175
    %vm196 = vcmask 1041409
    %v197 = vsel %vm196, %v193, %v192
    %vm199 = vcmask 254976
    %200 = vst.msk [vmem:[#allocation2] sm:$0x3] %vm199, %v197
    // Predicated region
    $region18: #{att_layer_pallas.1} parent=1 // pred_check
      _
    $region19: #{att_layer_pallas.1} parent=1 // pred_check_branch
      %202 = sbr.rel (0) target = $region21
    $region20: #{att_layer_pallas.1} parent=1 // pred_region
      %s204 = ssub.s32 32, 32
      %205 = vsyncadd [#allocation3], %s204
      %s207 = sshll.u32 [#allocation2], 4
      %s208 = int_to_ptr.vmem [resolvable:$true] %s207
      %210 = dma.vmem_to_hbm [thread:$0]  %s208, 32, %s4, [#allocation3]
    $region21: #{att_layer_pallas.1} parent=1 // pred_fallthru
      _
    // Predicated region
    $region22: #{att_layer_pallas.1} parent=1 // pred_check
      _
    $region23: #{att_layer_pallas.1} parent=1 // pred_check_branch
      %212 = sbr.rel (0) target = $region25
    $region24: #{att_layer_pallas.1} parent=1 // pred_region
      %213 = dma.done [#allocation3], 32
    $region25: #{att_layer_pallas.1} parent=1 // pred_fallthru
      _
    %214 = vsyncpa [#allocation3], 1

</llo_original>
